<compile_context>
chip_gen: v6e
topology: v6e:2x2x1
jax: 0.10.0
libtpu: 0.0.40
codegen_flags: <defaults>
</compile_context>

<pallas_src>
import math
from functools import partial

import jax
import jax.numpy as jnp
from jax.experimental import pallas as pl
from jax.experimental.pallas import tpu as pltpu


def _round_up(a, b):
    return ((a + b - 1) // b) * b


def _vmem_budget_bytes():
    """Generation-aware VMEM request cap (never the full scratchpad)."""
    cap = 128 * 1024 * 1024
    try:
        info = pltpu.get_tpu_info()
        cap = int(getattr(info, "vmem_capacity_bytes", cap)) or cap
    except Exception:
        cap = 64 * 1024 * 1024          # conservative if the query is unavailable
    return int(cap * 3 // 4)            # ~96 MiB on v5e/v6e, ~48 MiB on v7x


def _pick_k_tiling(k):
    """Return (tk, kp) with tk | kp, kp >= k, avoiding a patch re-pad when possible."""
    if k <= 1024:
        return k, k                     # single K step, full-dim blocks
    for tk in (1024, 512, 256, 128):    # MXU-friendly multiples (256 on v6e/v7x, 128 on v5e)
        if k % tk == 0:
            return tk, k
    kp = _round_up(k, 512)
    return 512, kp


def _qconv_matmul_kernel(p_ref, w_ref, e_ref, b_ref, o_ref, acc_ref):
    """Fused: quantize the raw weight tile, bf16 matmul into an f32 VMEM
    accumulator over the K grid axis, apply 2^e per-channel scale on finalize.

    p_ref: (tm, tk) bf16 im2col patch tile
    w_ref: (tk, tn) f32 raw weight tile
    e_ref, b_ref: (1, tn) per-out-channel exponent / bit-width params
    o_ref: (tm, tn) f32 output tile;  acc_ref: (tm, tn) f32 scratch
    """
    k = pl.program_id(2)

    @pl.when(k == 0)
    def _():
        acc_ref[...] = jnp.zeros_like(acc_ref)

    e = e_ref[...]                                   # (1, tn)
    b_r = jnp.maximum(b_ref[...], 0.0)               # relu(b)
    half = jnp.exp2(b_r - 1.0)                       # 2^(relu(b)-1)
    qw = jnp.clip(jnp.exp2(-e) * w_ref[...], -half, half - 1.0)
    # round-half-to-even matches torch.round; result is a small integer,
    # exact in bf16 for bit widths <= 8 (2^e factored out below).
    w_q = jnp.round(qw).astype(jnp.bfloat16)

    acc_ref[...] += jnp.dot(p_ref[...], w_q,
                            preferred_element_type=jnp.float32)

    @pl.when(k == pl.num_programs(2) - 1)
    def _():
        # Per-channel 2^e rescale in the epilogue (exact power-of-two multiply).
        o_ref[...] = (acc_ref[...] * jnp.exp2(e)).astype(o_ref.dtype)


def _im2col(x, kh, kw):
    # x: (N, Cin, H, W) -> patches (N*OH*OW, Cin*KH*KW), K ordered (Cin, kh, kw)
    # TODO(synk): eliminate this HBM-materialized im2col (shifted-window (kh,kw)
    # grid axes / in-kernel patch build) to cut input traffic by ~KH*KW-fold.
    n, cin, h, w = x.shape
    oh, ow = h - kh + 1, w - kw + 1
    cols = []
    for i in range(kh):
        for j in range(kw):
            cols.append(x[:, :, i:i + oh, j:j + ow])       # (N, Cin, OH, OW)
    patches = jnp.stack(cols, axis=2)                      # (N, Cin, KH*KW, OH, OW)
    patches = jnp.transpose(patches, (0, 3, 4, 1, 2))      # (N, OH, OW, Cin, KH*KW)
    return patches.reshape(n * oh * ow, cin * kh * kw), (n, oh, ow)


@partial(jax.jit, static_argnames=("kernel_size",))
def qconv2d_forward(x, weight, e, b, *, kernel_size):
    """x: (N, Cin, H, W) f32; weight: (Cout, Cin, KH, KW) f32; e, b: (Cout,1,1,1)."""
    kh, kw = kernel_size
    cout, cin = weight.shape[0], weight.shape[1]
    k = cin * kh * kw

    # bf16 activations: halves im2col HBM traffic and runs the MXU at native rate.
    patches, (n, oh, ow) = _im2col(x.astype(jnp.bfloat16), kh, kw)   # (M, K) bf16
    m = patches.shape[0]

    # ---- tiling -------------------------------------------------------------
    tk, kp = _pick_k_tiling(k)
    if kp != k:                                   # rare: only when no nice tk divides K
        patches = jnp.pad(patches, ((0, 0), (0, kp - k)))

    cout_p = _round_up(cout, 128)                 # lane-dense output columns
    tn = 256 if (cout_p % 256 == 0 and cout_p > 128) else 128
    tm = m if m <= 512 else 512                   # full-dim block for tiny M, else 512

    # ---- weight / per-channel params (raw f32; quantized inside the kernel) --
    w_mat = weight.reshape(cout, k).T             # (K, Cout), Cin-major K ordering
    w_mat = jnp.pad(w_mat, ((0, kp - k), (0, cout_p - cout)))
    e_row = jnp.pad(e.reshape(1, cout), ((0, 0), (0, cout_p - cout)))
    b_row = jnp.pad(b.reshape(1, cout), ((0, 0), (0, cout_p - cout)))

    grid = (pl.cdiv(m, tm), cout_p // tn, kp // tk)

    # VMEM budget: double-buffered bf16 patches + f32 weights + f32 out + acc.
    est_bytes = (2 * tm * tk * 2 + 2 * tk * tn * 4 + 2 * tm * tn * 4
                 + tm * tn * 4 + 4 * tn * 4)
    vmem_limit = int(min(max(2 * est_bytes, 16 * 1024 * 1024), _vmem_budget_bytes()))

    out = pl.pallas_call(
        _qconv_matmul_kernel,
        out_shape=jax.ShapeDtypeStruct((m, cout_p), jnp.float32),
        grid_spec=pltpu.PrefetchScalarGridSpec(
            num_scalar_prefetch=0,
            grid=grid,
            in_specs=[
                pl.BlockSpec((tm, tk), lambda i, j, kk: (i, kk)),   # patch tile (streams)
                pl.BlockSpec((tk, tn), lambda i, j, kk: (kk, j)),   # raw weight tile
                pl.BlockSpec((1, tn), lambda i, j, kk: (0, j)),     # e row
                pl.BlockSpec((1, tn), lambda i, j, kk: (0, j)),     # b row
            ],
            out_specs=pl.BlockSpec((tm, tn), lambda i, j, kk: (i, j)),
            scratch_shapes=[pltpu.VMEM((tm, tn), jnp.float32)],
        ),
        compiler_params=pltpu.CompilerParams(
            dimension_semantics=("parallel", "parallel", "arbitrary"),
            vmem_limit_bytes=vmem_limit),
    )(patches, w_mat, e_row, b_row)

    out = out[:, :cout]                                    # drop Cout padding
    out = out.reshape(n, oh, ow, cout)
    return jnp.transpose(out, (0, 3, 1, 2))                # NCHW


def _reference(x, weight, e, b):
    # Pure-JAX f32 reference matching the PyTorch forward.
    b_r = jnp.maximum(b, 0.0)
    half = jnp.exp2(b_r - 1.0)
    qw = jnp.clip(jnp.exp2(-e) * weight, -half, half - 1.0)
    w_eff = jnp.exp2(e) * jnp.round(qw)
    return jax.lax.conv_general_dilated(
        x, w_eff, window_strides=(1, 1), padding="VALID",
        dimension_numbers=("NCHW", "OIHW", "NCHW"))


if __name__ == "__main__":
    # Small shapes consistent with the module: N=2, Cin=4, Cout=8, H=W=16, k=3
    N, Cin, Cout, H, W, Ksz = 2, 4, 8, 16, 16, 3

    key = jax.random.PRNGKey(0)
    wkey, xkey = jax.random.split(key)
    scale = 1.0 / math.sqrt(Cin * Ksz * Ksz)
    weight = jax.random.uniform(
        wkey, (Cout, Cin, Ksz, Ksz), minval=-scale, maxval=scale,
        dtype=jnp.float32)
    e = jnp.full((Cout, 1, 1, 1), -8.0, dtype=jnp.float32)
    b = jnp.full((Cout, 1, 1, 1), 2.0, dtype=jnp.float32)
    x = jax.random.normal(xkey, (N, Cin, H, W), dtype=jnp.float32)

    y = jax.block_until_ready(qconv2d_forward(x, weight, e, b, kernel_size=(Ksz, Ksz)))
    y_ref = jax.block_until_ready(_reference(x, weight, e, b))

    assert y.shape == (N, Cout, H - Ksz + 1, W - Ksz + 1)
    # Tolerance accounts for the intentional bf16 activation cast (weight side is
    # exact: integer round(qw) in bf16, power-of-two 2^e epilogue scale).
    assert jnp.allclose(y, y_ref, atol=2e-3, rtol=2e-2), \
        float(jnp.max(jnp.abs(y - y_ref)))

    print("KERNEL_OK")
</pallas_src>

<mosaic_0001>
module attributes {stable_mosaic.version = 11 : i64} {
  func.func @_qconv_matmul_kernel(%arg0: i32, %arg1: i32, %arg2: i32, %arg3: memref<392x36xbf16, #tpu.memory_space<vmem>>, %arg4: memref<36x128xf32, #tpu.memory_space<vmem>>, %arg5: memref<1x128xf32, #tpu.memory_space<vmem>>, %arg6: memref<1x128xf32, #tpu.memory_space<vmem>>, %arg7: memref<392x128xf32, #tpu.memory_space<vmem>>, %arg8: memref<392x128xf32, #tpu.memory_space<vmem>>) attributes {dimension_semantics = [#tpu.dimension_semantics<parallel>, #tpu.dimension_semantics<parallel>, #tpu.dimension_semantics<arbitrary>], iteration_bounds = array<i64: 1, 1, 1>, scalar_prefetch = 0 : i64, scratch_operands = 1 : i64, tpu.core_type = #tpu.core_type<tc>, window_params = [{transform_indices = @transform_0, window_bounds = array<i64: 392, 36>}, {transform_indices = @transform_1, window_bounds = array<i64: 36, 128>}, {transform_indices = @transform_2, window_bounds = array<i64: 1, 128>}, {transform_indices = @transform_3, window_bounds = array<i64: 1, 128>}, {transform_indices = @transform_4, window_bounds = array<i64: 392, 128>}]} {
    %c0_i32 = arith.constant 0 : i32
    %0 = arith.cmpi eq, %arg2, %c0_i32 : i32
    %1 = arith.extui %0 : i1 to i32
    %c0_i32_0 = arith.constant 0 : i32
    %2 = arith.cmpi ne, %1, %c0_i32_0 : i32
    scf.if %2 {
      %cst_19 = arith.constant 0.000000e+00 : f32
      %34 = vector.broadcast %cst_19 : f32 to vector<392x128xf32>
      %c0_20 = arith.constant 0 : index
      %c0_21 = arith.constant 0 : index
      %35 = vector.load %arg8[%c0_20, %c0_21] : memref<392x128xf32, #tpu.memory_space<vmem>>, vector<392x128xf32>
      tpu.vector_store %arg8[%c0_20, %c0_21], %34 {strides = array<i32>} : memref<392x128xf32, #tpu.memory_space<vmem>>, vector<392x128xf32>,
    } else {
    }
    %c0 = arith.constant 0 : index
    %c0_1 = arith.constant 0 : index
    %3 = vector.load %arg5[%c0, %c0_1] : memref<1x128xf32, #tpu.memory_space<vmem>>, vector<1x128xf32>
    %c0_2 = arith.constant 0 : index
    %c0_3 = arith.constant 0 : index
    %4 = vector.load %arg6[%c0_2, %c0_3] : memref<1x128xf32, #tpu.memory_space<vmem>>, vector<1x128xf32>
    %cst = arith.constant 0.000000e+00 : f32
    %5 = vector.broadcast %cst : f32 to vector<1x128xf32>
    %6 = arith.maximumf %4, %5 : vector<1x128xf32>
    %cst_4 = arith.constant 1.000000e+00 : f32
    %7 = vector.broadcast %cst_4 : f32 to vector<1x128xf32>
    %8 = arith.subf %6, %7 : vector<1x128xf32>
    %9 = math.exp2 %8 : vector<1x128xf32>
    %cst_5 = arith.constant 0.000000e+00 : f32
    %10 = vector.broadcast %cst_5 : f32 to vector<1x128xf32>
    %11 = arith.subf %10, %3 : vector<1x128xf32>
    %12 = math.exp2 %11 : vector<1x128xf32>
    %c0_6 = arith.constant 0 : index
    %c0_7 = arith.constant 0 : index
    %13 = vector.load %arg4[%c0_6, %c0_7] : memref<36x128xf32, #tpu.memory_space<vmem>>, vector<36x128xf32>
    %14 = vector.broadcast %12 : vector<1x128xf32> to vector<36x128xf32>
    %15 = arith.mulf %14, %13 : vector<36x128xf32>
    %cst_8 = arith.constant 0.000000e+00 : f32
    %16 = vector.broadcast %cst_8 : f32 to vector<1x128xf32>
    %17 = arith.subf %16, %9 : vector<1x128xf32>
    %cst_9 = arith.constant 1.000000e+00 : f32
    %18 = vector.broadcast %cst_9 : f32 to vector<1x128xf32>
    %19 = arith.subf %9, %18 : vector<1x128xf32>
    %20 = vector.broadcast %17 : vector<1x128xf32> to vector<36x128xf32>
    %21 = arith.maximumf %20, %15 : vector<36x128xf32>
    %22 = vector.broadcast %19 : vector<1x128xf32> to vector<36x128xf32>
    %23 = arith.minimumf %22, %21 : vector<36x128xf32>
    %24 = math.roundeven %23 : vector<36x128xf32>
    %25 = arith.truncf %24 : vector<36x128xf32> to vector<36x128xbf16>
    %c0_10 = arith.constant 0 : index
    %c0_11 = arith.constant 0 : index
    %26 = vector.load %arg8[%c0_10, %c0_11] : memref<392x128xf32, #tpu.memory_space<vmem>>, vector<392x128xf32>
    %c0_12 = arith.constant 0 : index
    %c0_13 = arith.constant 0 : index
    %27 = vector.load %arg3[%c0_12, %c0_13] : memref<392x36xbf16, #tpu.memory_space<vmem>>, vector<392x36xbf16>
    %cst_14 = arith.constant dense<0.000000e+00> : vector<392x128xf32>
    %28 = tpu.matmul %27, %25, %cst_14 {dimension_numbers = #tpu.dot_dimension_numbers<[1], [0], [0], [1], [0, 0, 1, 1], [], []>} : vector<392x36xbf16>, vector<36x128xbf16>, vector<392x128xf32> -> vector<392x128xf32>
    %29 = arith.addf %26, %28 : vector<392x128xf32>
    %c0_15 = arith.constant 0 : index
    %c0_16 = arith.constant 0 : index
    %30 = vector.load %arg8[%c0_15, %c0_16] : memref<392x128xf32, #tpu.memory_space<vmem>>, vector<392x128xf32>
    tpu.vector_store %arg8[%c0_15, %c0_16], %29 {strides = array<i32>} : memref<392x128xf32, #tpu.memory_space<vmem>>, vector<392x128xf32>,
    %c0_i32_17 = arith.constant 0 : i32
    %31 = arith.cmpi eq, %arg2, %c0_i32_17 : i32
    %32 = arith.extui %31 : i1 to i32
    %c0_i32_18 = arith.constant 0 : i32
    %33 = arith.cmpi ne, %32, %c0_i32_18 : i32
    scf.if %33 {
      %c0_19 = arith.constant 0 : index
      %c0_20 = arith.constant 0 : index
      %34 = vector.load %arg8[%c0_19, %c0_20] : memref<392x128xf32, #tpu.memory_space<vmem>>, vector<392x128xf32>
      %35 = math.exp2 %3 : vector<1x128xf32>
      %36 = vector.broadcast %35 : vector<1x128xf32> to vector<392x128xf32>
      %37 = arith.mulf %34, %36 : vector<392x128xf32>
      %c0_21 = arith.constant 0 : index
      %c0_22 = arith.constant 0 : index
      %38 = vector.load %arg7[%c0_21, %c0_22] : memref<392x128xf32, #tpu.memory_space<vmem>>, vector<392x128xf32>
      tpu.vector_store %arg7[%c0_21, %c0_22], %37 {strides = array<i32>} : memref<392x128xf32, #tpu.memory_space<vmem>>, vector<392x128xf32>,
    } else {
    }
    return
  }
  func.func @transform_0(%arg0: i32, %arg1: i32, %arg2: i32) -> (i32, i32) {
    %c0_i32 = arith.constant 0 : i32
    return %arg0, %arg2 : i32, i32
  }
  func.func @transform_1(%arg0: i32, %arg1: i32, %arg2: i32) -> (i32, i32) {
    %c0_i32 = arith.constant 0 : i32
    return %arg2, %arg1 : i32, i32
  }
  func.func @transform_2(%arg0: i32, %arg1: i32, %arg2: i32) -> (i32, i32) {
    %c0_i32 = arith.constant 0 : i32
    %c0_i32_0 = arith.constant 0 : i32
    return %c0_i32, %arg1 : i32, i32
  }
  func.func @transform_3(%arg0: i32, %arg1: i32, %arg2: i32) -> (i32, i32) {
    %c0_i32 = arith.constant 0 : i32
    %c0_i32_0 = arith.constant 0 : i32
    return %c0_i32, %arg1 : i32, i32
  }
  func.func @transform_4(%arg0: i32, %arg1: i32, %arg2: i32) -> (i32, i32) {
    %c0_i32 = arith.constant 0 : i32
    return %arg0, %arg1 : i32, i32
  }
}

</mosaic_0001>

<llo_original>
// kernel: qconv2d_forward.1
$region0: #{qconv2d_forward.1}
  #allocation0 [shape = 'u32[]', space=smem, size = 0x4, offset = 0x4, fixed_abs, tag = 'smem constant byte address 0x4 - core index']
  #allocation1 [shape = 'u32[144,128]{1,0:T(1,128)}', space=vmem, size = 0x12000, scoped, tag = 'internal scratch']
  #allocation2 [shape = 'f32[392,128]{1,0:T(8,128)}', space=vmem, size = 0x31000, scoped, tag = 'scratch operand']
  %s0 = inlined_call_operand.vmem [shape: bf16[392,36], index: 0, kind: input, shape index: {}]
  %s1 = inlined_call_operand.vmem [shape: f32[36,128], index: 1, kind: input, shape index: {}]
  %s2 = inlined_call_operand.vmem [shape: f32[1,128], index: 2, kind: input, shape index: {}]
  %s3 = inlined_call_operand.vmem [shape: f32[1,128], index: 3, kind: input, shape index: {}]
  %s4 = inlined_call_operand.vmem [shape: f32[392,128], index: 4, kind: output, shape index: {}]
  %s5 = sld [smem:[#allocation0]]
  $region34: #{qconv2d_forward.1} parent=0
    _
  %s7 = ssub.s32 1, %s5
  %s8 = scalar_select 0, %s7, %s5
  // Predicated region
  $region2: #{qconv2d_forward.1} parent=0 // pred_check
    _
  $region3: #{qconv2d_forward.1} parent=0 // pred_check_branch
    %10 = sbr.rel (0) target = $region5
  $region4: #{qconv2d_forward.1} parent=0 // pred_region
    _
  $region5: #{qconv2d_forward.1} parent=0 // pred_fallthru
    _
  // Predicated region
  $region6: #{qconv2d_forward.1} parent=0 // pred_check
    _
  $region7: #{qconv2d_forward.1} parent=0 // pred_check_branch
    %12 = sbr.rel (0) target = $region9
  $region8: #{qconv2d_forward.1} parent=0 // pred_region
    _
  $region9: #{qconv2d_forward.1} parent=0 // pred_fallthru
    _
  // Predicated region
  $region10: #{qconv2d_forward.1} parent=0 // pred_check
    _
  $region11: #{qconv2d_forward.1} parent=0 // pred_check_branch
    %14 = sbr.rel (0) target = $region13
  $region12: #{qconv2d_forward.1} parent=0 // pred_region
    _
  $region13: #{qconv2d_forward.1} parent=0 // pred_fallthru
    _
  // Predicated region
  $region14: #{qconv2d_forward.1} parent=0 // pred_check
    _
  $region15: #{qconv2d_forward.1} parent=0 // pred_check_branch
    %16 = sbr.rel (0) target = $region17
  $region16: #{qconv2d_forward.1} parent=0 // pred_region
    _
  $region17: #{qconv2d_forward.1} parent=0 // pred_fallthru
    _
  %p18 = scmp.eq.s32.totalorder 0, 0
  // Predicated region
  $region18: #{qconv2d_forward.1} parent=0 // pred_check
    %p19 = pneg %p18
  $region19: #{qconv2d_forward.1} parent=0 // pred_check_branch
    %21 = sbr.rel (%p19) target = $region21
  $region20: #{qconv2d_forward.1} parent=0 // pred_region
    %22 = vst [vmem:[#allocation2] sm:$0xff] 0.0
    %23 = vst [vmem:[#allocation2 + $0x8] sm:$0xff] 0.0
    %24 = vst [vmem:[#allocation2 + $0x10] sm:$0xff] 0.0
    %25 = vst [vmem:[#allocation2 + $0x18] sm:$0xff] 0.0
    %26 = vst [vmem:[#allocation2 + $0x20] sm:$0xff] 0.0
    %27 = vst [vmem:[#allocation2 + $0x28] sm:$0xff] 0.0
    %28 = vst [vmem:[#allocation2 + $0x30] sm:$0xff] 0.0
    %29 = vst [vmem:[#allocation2 + $0x38] sm:$0xff] 0.0
    %30 = vst [vmem:[#allocation2 + $0x40] sm:$0xff] 0.0
    %31 = vst [vmem:[#allocation2 + $0x48] sm:$0xff] 0.0
    %32 = vst [vmem:[#allocation2 + $0x50] sm:$0xff] 0.0
    %33 = vst [vmem:[#allocation2 + $0x58] sm:$0xff] 0.0
    %34 = vst [vmem:[#allocation2 + $0x60] sm:$0xff] 0.0
    %35 = vst [vmem:[#allocation2 + $0x68] sm:$0xff] 0.0
    %36 = vst [vmem:[#allocation2 + $0x70] sm:$0xff] 0.0
    %37 = vst [vmem:[#allocation2 + $0x78] sm:$0xff] 0.0
    %38 = vst [vmem:[#allocation2 + $0x80] sm:$0xff] 0.0
    %39 = vst [vmem:[#allocation2 + $0x88] sm:$0xff] 0.0
    %40 = vst [vmem:[#allocation2 + $0x90] sm:$0xff] 0.0
    %41 = vst [vmem:[#allocation2 + $0x98] sm:$0xff] 0.0
    %42 = vst [vmem:[#allocation2 + $0xa0] sm:$0xff] 0.0
    %43 = vst [vmem:[#allocation2 + $0xa8] sm:$0xff] 0.0
    %44 = vst [vmem:[#allocation2 + $0xb0] sm:$0xff] 0.0
    %45 = vst [vmem:[#allocation2 + $0xb8] sm:$0xff] 0.0
    %46 = vst [vmem:[#allocation2 + $0xc0] sm:$0xff] 0.0
    %47 = vst [vmem:[#allocation2 + $0xc8] sm:$0xff] 0.0
    %48 = vst [vmem:[#allocation2 + $0xd0] sm:$0xff] 0.0
    %49 = vst [vmem:[#allocation2 + $0xd8] sm:$0xff] 0.0
    %50 = vst [vmem:[#allocation2 + $0xe0] sm:$0xff] 0.0
    %51 = vst [vmem:[#allocation2 + $0xe8] sm:$0xff] 0.0
    %52 = vst [vmem:[#allocation2 + $0xf0] sm:$0xff] 0.0
    %53 = vst [vmem:[#allocation2 + $0xf8] sm:$0xff] 0.0
    %54 = vst [vmem:[#allocation2 + $0x100] sm:$0xff] 0.0
    %55 = vst [vmem:[#allocation2 + $0x108] sm:$0xff] 0.0
    %56 = vst [vmem:[#allocation2 + $0x110] sm:$0xff] 0.0
    %57 = vst [vmem:[#allocation2 + $0x118] sm:$0xff] 0.0
    %58 = vst [vmem:[#allocation2 + $0x120] sm:$0xff] 0.0
    %59 = vst [vmem:[#allocation2 + $0x128] sm:$0xff] 0.0
    %60 = vst [vmem:[#allocation2 + $0x130] sm:$0xff] 0.0
    %61 = vst [vmem:[#allocation2 + $0x138] sm:$0xff] 0.0
    %62 = vst [vmem:[#allocation2 + $0x140] sm:$0xff] 0.0
    %63 = vst [vmem:[#allocation2 + $0x148] sm:$0xff] 0.0
    %64 = vst [vmem:[#allocation2 + $0x150] sm:$0xff] 0.0
    %65 = vst [vmem:[#allocation2 + $0x158] sm:$0xff] 0.0
    %66 = vst [vmem:[#allocation2 + $0x160] sm:$0xff] 0.0
    %67 = vst [vmem:[#allocation2 + $0x168] sm:$0xff] 0.0
    %68 = vst [vmem:[#allocation2 + $0x170] sm:$0xff] 0.0
    %69 = vst [vmem:[#allocation2 + $0x178] sm:$0xff] 0.0
    %70 = vst [vmem:[#allocation2 + $0x180] sm:$0xff] 0.0
  $region21: #{qconv2d_forward.1} parent=0 // pred_fallthru
    _
  %v71 = vld [vmem:[%s2] sm:$0x1]
  %v72 = vld [vmem:[%s3] sm:$0x1]
  %v73 = vmax.f32 %v72, 0.0
  %v74 = vsub.f32 %v73, 1.0
  %v75 = vpow.pop %v74
  %v76 = vsub.f32 0.0, %v71
  %v77 = vpow.pop %v76
  %v78 = vld [vmem:[%s1] sm:$0xff]
  %v79 = vld [vmem:[%s1 + $0x8] sm:$0xff]
  %v80 = vld [vmem:[%s1 + $0x10] sm:$0xff]
  %v81 = vld [vmem:[%s1 + $0x18] sm:$0xff]
  %v82 = vld [vmem:[%s1 + $0x20] sm:$0xf]
  %v84 = vlaneseq
  %v85 = vshrl.u32 %v84, 7
  %v86 = vsub.s32 0, %v85
  %v87 = vrot.slane %v77, %v86
  %v89 = vmul.f32 %v87, %v78
  %v90 = vmul.f32 %v87, %v79
  %v91 = vmul.f32 %v87, %v80
  %v92 = vmul.f32 %v87, %v81
  %v93 = vmul.f32 %v87, %v82
  %v94 = vsub.f32 0.0, %v75
  %v95 = vsub.f32 %v75, 1.0
  %v97 = vlaneseq
  %v98 = vshrl.u32 %v97, 7
  %v99 = vsub.s32 0, %v98
  %v100 = vrot.slane %v94, %v99
  %v102 = vmax.f32 %v100, %v89
  %v103 = vmax.f32 %v100, %v90
  %v104 = vmax.f32 %v100, %v91
  %v105 = vmax.f32 %v100, %v92
  %v106 = vmax.f32 %v100, %v93
  %v108 = vlaneseq
  %v109 = vshrl.u32 %v108, 7
  %v110 = vsub.s32 0, %v109
  %v111 = vrot.slane %v95, %v110
  %v113 = vmin.f32 %v111, %v102
  %v114 = vmin.f32 %v111, %v103
  %v115 = vmin.f32 %v111, %v104
  %v116 = vmin.f32 %v111, %v105
  %v117 = vmin.f32 %v111, %v106
  %v118 = vround.ne.pseudo %v113
  %v119 = vround.ne.pseudo %v114
  %v120 = vround.ne.pseudo %v115
  %v121 = vround.ne.pseudo %v116
  %v122 = vround.ne.pseudo %v117
  %v123 = vpack.c.bf16 %v119, %v118
  %v124 = vpack.c.bf16 %v121, %v120
  %v125 = vpack.c.bf16 %v122, %v122
  %v126 = vld [vmem:[#allocation2] sm:$0xff]
  %v127 = vld [vmem:[#allocation2 + $0x8] sm:$0xff]
  %v128 = vld [vmem:[#allocation2 + $0x10] sm:$0xff]
  %v129 = vld [vmem:[#allocation2 + $0x18] sm:$0xff]
  %v130 = vld [vmem:[#allocation2 + $0x20] sm:$0xff]
  %v131 = vld [vmem:[#allocation2 + $0x28] sm:$0xff]
  %v132 = vld [vmem:[#allocation2 + $0x30] sm:$0xff]
  %v133 = vld [vmem:[#allocation2 + $0x38] sm:$0xff]
  %v134 = vld [vmem:[#allocation2 + $0x40] sm:$0xff]
  %v135 = vld [vmem:[#allocation2 + $0x48] sm:$0xff]
  %v136 = vld [vmem:[#allocation2 + $0x50] sm:$0xff]
  %v137 = vld [vmem:[#allocation2 + $0x58] sm:$0xff]
  %v138 = vld [vmem:[#allocation2 + $0x60] sm:$0xff]
  %v139 = vld [vmem:[#allocation2 + $0x68] sm:$0xff]
  %v140 = vld [vmem:[#allocation2 + $0x70] sm:$0xff]
  %v141 = vld [vmem:[#allocation2 + $0x78] sm:$0xff]
  %v142 = vld [vmem:[#allocation2 + $0x80] sm:$0xff]
  %v143 = vld [vmem:[#allocation2 + $0x88] sm:$0xff]
  %v144 = vld [vmem:[#allocation2 + $0x90] sm:$0xff]
  %v145 = vld [vmem:[#allocation2 + $0x98] sm:$0xff]
  %v146 = vld [vmem:[#allocation2 + $0xa0] sm:$0xff]
  %v147 = vld [vmem:[#allocation2 + $0xa8] sm:$0xff]
  %v148 = vld [vmem:[#allocation2 + $0xb0] sm:$0xff]
  %v149 = vld [vmem:[#allocation2 + $0xb8] sm:$0xff]
  %v150 = vld [vmem:[#allocation2 + $0xc0] sm:$0xff]
  %v151 = vld [vmem:[#allocation2 + $0xc8] sm:$0xff]
  %v152 = vld [vmem:[#allocation2 + $0xd0] sm:$0xff]
  %v153 = vld [vmem:[#allocation2 + $0xd8] sm:$0xff]
  %v154 = vld [vmem:[#allocation2 + $0xe0] sm:$0xff]
  %v155 = vld [vmem:[#allocation2 + $0xe8] sm:$0xff]
  %v156 = vld [vmem:[#allocation2 + $0xf0] sm:$0xff]
  %v157 = vld [vmem:[#allocation2 + $0xf8] sm:$0xff]
  %v158 = vld [vmem:[#allocation2 + $0x100] sm:$0xff]
  %v159 = vld [vmem:[#allocation2 + $0x108] sm:$0xff]
  %v160 = vld [vmem:[#allocation2 + $0x110] sm:$0xff]
  %v161 = vld [vmem:[#allocation2 + $0x118] sm:$0xff]
  %v162 = vld [vmem:[#allocation2 + $0x120] sm:$0xff]
  %v163 = vld [vmem:[#allocation2 + $0x128] sm:$0xff]
  %v164 = vld [vmem:[#allocation2 + $0x130] sm:$0xff]
  %v165 = vld [vmem:[#allocation2 + $0x138] sm:$0xff]
  %v166 = vld [vmem:[#allocation2 + $0x140] sm:$0xff]
  %v167 = vld [vmem:[#allocation2 + $0x148] sm:$0xff]
  %v168 = vld [vmem:[#allocation2 + $0x150] sm:$0xff]
  %v169 = vld [vmem:[#allocation2 + $0x158] sm:$0xff]
  %v170 = vld [vmem:[#allocation2 + $0x160] sm:$0xff]
  %v171 = vld [vmem:[#allocation2 + $0x168] sm:$0xff]
  %v172 = vld [vmem:[#allocation2 + $0x170] sm:$0xff]
  %v173 = vld [vmem:[#allocation2 + $0x178] sm:$0xff]
  %v174 = vld [vmem:[#allocation2 + $0x180] sm:$0xff]
  %v175 = vld [vmem:[%s0] sm:$0xf]
  %v176 = vld [vmem:[%s0 + $0x4] sm:$0xf]
  %v177 = vld [vmem:[%s0 + $0x8] sm:$0xf]
  %v178 = vld [vmem:[%s0 + $0xc] sm:$0xf]
  %v179 = vld [vmem:[%s0 + $0x10] sm:$0xf]
  %v180 = vld [vmem:[%s0 + $0x14] sm:$0xf]
  %v181 = vld [vmem:[%s0 + $0x18] sm:$0xf]
  %v182 = vld [vmem:[%s0 + $0x1c] sm:$0xf]
  %v183 = vld [vmem:[%s0 + $0x20] sm:$0xf]
  %v184 = vld [vmem:[%s0 + $0x24] sm:$0xf]
  %v185 = vld [vmem:[%s0 + $0x28] sm:$0xf]
  %v186 = vld [vmem:[%s0 + $0x2c] sm:$0xf]
  %v187 = vld [vmem:[%s0 + $0x30] sm:$0xf]
  %v188 = vld [vmem:[%s0 + $0x34] sm:$0xf]
  %v189 = vld [vmem:[%s0 + $0x38] sm:$0xf]
  %v190 = vld [vmem:[%s0 + $0x3c] sm:$0xf]
  %v191 = vld [vmem:[%s0 + $0x40] sm:$0xf]
  %v192 = vld [vmem:[%s0 + $0x44] sm:$0xf]
  %v193 = vld [vmem:[%s0 + $0x48] sm:$0xf]
  %v194 = vld [vmem:[%s0 + $0x4c] sm:$0xf]
  %v195 = vld [vmem:[%s0 + $0x50] sm:$0xf]
  %v196 = vld [vmem:[%s0 + $0x54] sm:$0xf]
  %v197 = vld [vmem:[%s0 + $0x58] sm:$0xf]
  %v198 = vld [vmem:[%s0 + $0x5c] sm:$0xf]
  %v199 = vld [vmem:[%s0 + $0x60] sm:$0xf]
  %v200 = vld [vmem:[%s0 + $0x64] sm:$0xf]
  %v201 = vld [vmem:[%s0 + $0x68] sm:$0xf]
  %v202 = vld [vmem:[%s0 + $0x6c] sm:$0xf]
  %v203 = vld [vmem:[%s0 + $0x70] sm:$0xf]
  %v204 = vld [vmem:[%s0 + $0x74] sm:$0xf]
  %v205 = vld [vmem:[%s0 + $0x78] sm:$0xf]
  %v206 = vld [vmem:[%s0 + $0x7c] sm:$0xf]
  %v207 = vld [vmem:[%s0 + $0x80] sm:$0xf]
  %v208 = vld [vmem:[%s0 + $0x84] sm:$0xf]
  %v209 = vld [vmem:[%s0 + $0x88] sm:$0xf]
  %v210 = vld [vmem:[%s0 + $0x8c] sm:$0xf]
  %v211 = vld [vmem:[%s0 + $0x90] sm:$0xf]
  %v212 = vld [vmem:[%s0 + $0x94] sm:$0xf]
  %v213 = vld [vmem:[%s0 + $0x98] sm:$0xf]
  %v214 = vld [vmem:[%s0 + $0x9c] sm:$0xf]
  %v215 = vld [vmem:[%s0 + $0xa0] sm:$0xf]
  %v216 = vld [vmem:[%s0 + $0xa4] sm:$0xf]
  %v217 = vld [vmem:[%s0 + $0xa8] sm:$0xf]
  %v218 = vld [vmem:[%s0 + $0xac] sm:$0xf]
  %v219 = vld [vmem:[%s0 + $0xb0] sm:$0xf]
  %v220 = vld [vmem:[%s0 + $0xb4] sm:$0xf]
  %v221 = vld [vmem:[%s0 + $0xb8] sm:$0xf]
  %v222 = vld [vmem:[%s0 + $0xbc] sm:$0xf]
  %v223 = vld [vmem:[%s0 + $0xc0] sm:$0xf]
  %v273 = vunpack.c.l.b16 %v175
  %v274 = vunpack.c.l.b16 %v176
  %v275 = vunpack.c.l.b16 %v177
  %v276 = vunpack.c.l.b16 %v178
  %v277 = vunpack.c.l.b16 %v179
  %v278 = vunpack.c.l.b16 %v180
  %v279 = vunpack.c.l.b16 %v181
  %v280 = vunpack.c.l.b16 %v182
  %v281 = vunpack.c.l.b16 %v183
  %v282 = vunpack.c.l.b16 %v184
  %v283 = vunpack.c.l.b16 %v185
  %v284 = vunpack.c.l.b16 %v186
  %v285 = vunpack.c.l.b16 %v187
  %v286 = vunpack.c.l.b16 %v188
  %v287 = vunpack.c.l.b16 %v189
  %v288 = vunpack.c.l.b16 %v190
  %v289 = vunpack.c.l.b16 %v191
  %v290 = vunpack.c.l.b16 %v192
  %v291 = vunpack.c.l.b16 %v193
  %v292 = vunpack.c.l.b16 %v194
  %v293 = vunpack.c.l.b16 %v195
  %v294 = vunpack.c.l.b16 %v196
  %v295 = vunpack.c.l.b16 %v197
  %v296 = vunpack.c.l.b16 %v198
  %v297 = vunpack.c.l.b16 %v199
  %v298 = vunpack.c.l.b16 %v200
  %v299 = vunpack.c.l.b16 %v201
  %v300 = vunpack.c.l.b16 %v202
  %v301 = vunpack.c.l.b16 %v203
  %v302 = vunpack.c.l.b16 %v204
  %v303 = vunpack.c.l.b16 %v205
  %v304 = vunpack.c.l.b16 %v206
  %v305 = vunpack.c.l.b16 %v207
  %v306 = vunpack.c.l.b16 %v208
  %v307 = vunpack.c.l.b16 %v209
  %v308 = vunpack.c.l.b16 %v210
  %v309 = vunpack.c.l.b16 %v211
  %v310 = vunpack.c.l.b16 %v212
  %v311 = vunpack.c.l.b16 %v213
  %v312 = vunpack.c.l.b16 %v214
  %v313 = vunpack.c.l.b16 %v215
  %v314 = vunpack.c.l.b16 %v216
  %v315 = vunpack.c.l.b16 %v217
  %v316 = vunpack.c.l.b16 %v218
  %v317 = vunpack.c.l.b16 %v219
  %v318 = vunpack.c.l.b16 %v220
  %v319 = vunpack.c.l.b16 %v221
  %v320 = vunpack.c.l.b16 %v222
  %v321 = vunpack.c.l.b16 %v223
  %v322 = vpack.c.b16 %v274, %v273
  %v323 = vpack.c.b16 %v276, %v275
  %v324 = vpack.c.b16 %v278, %v277
  %v325 = vpack.c.b16 %v280, %v279
  %v326 = vpack.c.b16 %v282, %v281
  %v327 = vpack.c.b16 %v284, %v283
  %v328 = vpack.c.b16 %v286, %v285
  %v329 = vpack.c.b16 %v288, %v287
  %v330 = vpack.c.b16 %v290, %v289
  %v331 = vpack.c.b16 %v292, %v291
  %v332 = vpack.c.b16 %v294, %v293
  %v333 = vpack.c.b16 %v296, %v295
  %v334 = vpack.c.b16 %v298, %v297
  %v335 = vpack.c.b16 %v300, %v299
  %v336 = vpack.c.b16 %v302, %v301
  %v337 = vpack.c.b16 %v304, %v303
  %v338 = vpack.c.b16 %v306, %v305
  %v339 = vpack.c.b16 %v308, %v307
  %v340 = vpack.c.b16 %v310, %v309
  %v341 = vpack.c.b16 %v312, %v311
  %v342 = vpack.c.b16 %v314, %v313
  %v343 = vpack.c.b16 %v316, %v315
  %v344 = vpack.c.b16 %v318, %v317
  %v345 = vpack.c.b16 %v320, %v319
  %v346 = vpack.c.b16 %v321, %v321
  %vm347 = vcmask 293888
  %v349 = vsel %vm347, %v322, 0
  %v352 = vsel %vm347, %v323, 0
  %v355 = vsel %vm347, %v324, 0
  %v358 = vsel %vm347, %v325, 0
  %v361 = vsel %vm347, %v326, 0
  %v364 = vsel %vm347, %v327, 0
  %v367 = vsel %vm347, %v328, 0
  %v370 = vsel %vm347, %v329, 0
  %v373 = vsel %vm347, %v330, 0
  %v376 = vsel %vm347, %v331, 0
  %v379 = vsel %vm347, %v332, 0
  %v382 = vsel %vm347, %v333, 0
  %v385 = vsel %vm347, %v334, 0
  %v388 = vsel %vm347, %v335, 0
  %v391 = vsel %vm347, %v336, 0
  %v394 = vsel %vm347, %v337, 0
  %v397 = vsel %vm347, %v338, 0
  %v400 = vsel %vm347, %v339, 0
  %v403 = vsel %vm347, %v340, 0
  %v406 = vsel %vm347, %v341, 0
  %v409 = vsel %vm347, %v342, 0
  %v412 = vsel %vm347, %v343, 0
  %v415 = vsel %vm347, %v344, 0
  %v418 = vsel %vm347, %v345, 0
  %v421 = vsel %vm347, %v346, 0
  %vm423 = vcmask 1041408
  %v425 = vsel %vm423, %v125, 0
  %427 = vmatprep.subr.bf16.mxu0 0
  %428 = vmatpush1.bf16.msra.mxu0 0
  %429 = vmatprep.subr.bf16.mxu0 0
  %430 = vmatpush1.bf16.msra.mxu0 0
  %431 = vmatprep.subr.bf16.mxu0 0
  %432 = vmatpush1.bf16.msra.mxu0 0
  %433 = vmatprep.subr.bf16.mxu0 0
  %434 = vmatpush1.bf16.msra.mxu0 0
  %435 = vmatprep.subr.bf16.mxu0 0
  %436 = vmatpush1.bf16.msra.mxu0 0
  %437 = vmatprep.subr.bf16.mxu0 0
  %438 = vmatpush1.bf16.msra.mxu0 %v425
  %439 = vmatprep.subr.bf16.mxu0 0
  %440 = vmatpush1.bf16.msra.mxu0 %v124
  %441 = vmatprep.subr.bf16.mxu0 0
  %442 = vmatpush1.bf16.msra.mxu0 %v123
  %443 = vmatprep.subr.bf16.mxu0 0
  %444 = vmatpush2.bf16.msra.mxu0 0
  %445 = vmatprep.subr.bf16.mxu0 0
  %446 = vmatpush2.bf16.msra.mxu0 0
  %447 = vmatprep.subr.bf16.mxu0 0
  %448 = vmatpush2.bf16.msra.mxu0 0
  %449 = vmatprep.subr.bf16.mxu0 0
  %450 = vmatpush2.bf16.msra.mxu0 0
  %451 = vmatprep.subr.bf16.mxu0 0
  %452 = vmatpush2.bf16.msra.mxu0 0
  %453 = vmatprep.subr.bf16.mxu0 0
  %454 = vmatpush2.bf16.msra.mxu0 0
  %455 = vmatprep.subr.bf16.mxu0 0
  %456 = vmatpush2.bf16.msra.mxu0 0
  %457 = vmatprep.subr.bf16.mxu0 0
  %458 = vmatpush2.bf16.msra.mxu0 0
  %459 = vmatprep.mubr.bf16.mxu0 0
  %460 = vmatmul.mubr.bf16.gmra.mxu0 %v349
  %v461 = vpop.f32.mrf.mxu0
  %v462 = vadd.f32 0.0, %v461
  %v463 = vpop.f32.mrf.mxu0
  %v464 = vpop.f32.mrf.mxu0
  %v465 = vadd.f32 0.0, %v464
  %v466 = vpop.f32.mrf.mxu0
  %467 = vmatprep.mubr.bf16.mxu0 0
  %468 = vmatmul.mubr.bf16.gmra.mxu0 %v352
  %v469 = vpop.f32.mrf.mxu0
  %v470 = vadd.f32 0.0, %v469
  %v471 = vpop.f32.mrf.mxu0
  %v472 = vpop.f32.mrf.mxu0
  %v473 = vadd.f32 0.0, %v472
  %v474 = vpop.f32.mrf.mxu0
  %475 = vmatprep.mubr.bf16.mxu0 0
  %476 = vmatmul.mubr.bf16.gmra.mxu0 %v355
  %v477 = vpop.f32.mrf.mxu0
  %v478 = vadd.f32 0.0, %v477
  %v479 = vpop.f32.mrf.mxu0
  %v480 = vpop.f32.mrf.mxu0
  %v481 = vadd.f32 0.0, %v480
  %v482 = vpop.f32.mrf.mxu0
  %483 = vmatprep.mubr.bf16.mxu0 0
  %484 = vmatmul.mubr.bf16.gmra.mxu0 %v358
  %v485 = vpop.f32.mrf.mxu0
  %v486 = vadd.f32 0.0, %v485
  %v487 = vpop.f32.mrf.mxu0
  %v488 = vpop.f32.mrf.mxu0
  %v489 = vadd.f32 0.0, %v488
  %v490 = vpop.f32.mrf.mxu0
  %491 = vmatprep.mubr.bf16.mxu0 0
  %492 = vmatmul.mubr.bf16.gmra.mxu0 %v361
  %v493 = vpop.f32.mrf.mxu0
  %v494 = vadd.f32 0.0, %v493
  %v495 = vpop.f32.mrf.mxu0
  %v496 = vpop.f32.mrf.mxu0
  %v497 = vadd.f32 0.0, %v496
  %v498 = vpop.f32.mrf.mxu0
  %499 = vmatprep.mubr.bf16.mxu0 0
  %500 = vmatmul.mubr.bf16.gmra.mxu0 %v364
  %v501 = vpop.f32.mrf.mxu0
  %v502 = vadd.f32 0.0, %v501
  %v503 = vpop.f32.mrf.mxu0
  %v504 = vpop.f32.mrf.mxu0
  %v505 = vadd.f32 0.0, %v504
  %v506 = vpop.f32.mrf.mxu0
  %507 = vmatprep.mubr.bf16.mxu0 0
  %508 = vmatmul.mubr.bf16.gmra.mxu0 %v367
  %v509 = vpop.f32.mrf.mxu0
  %v510 = vadd.f32 0.0, %v509
  %v511 = vpop.f32.mrf.mxu0
  %v512 = vpop.f32.mrf.mxu0
  %v513 = vadd.f32 0.0, %v512
  %v514 = vpop.f32.mrf.mxu0
  %515 = vmatprep.mubr.bf16.mxu0 0
  %516 = vmatmul.mubr.bf16.gmra.mxu0 %v370
  %v517 = vpop.f32.mrf.mxu0
  %v518 = vadd.f32 0.0, %v517
  %v519 = vpop.f32.mrf.mxu0
  %v520 = vpop.f32.mrf.mxu0
  %v521 = vadd.f32 0.0, %v520
  %v522 = vpop.f32.mrf.mxu0
  %523 = vmatprep.mubr.bf16.mxu0 0
  %524 = vmatmul.mubr.bf16.gmra.mxu0 %v373
  %v525 = vpop.f32.mrf.mxu0
  %v526 = vadd.f32 0.0, %v525
  %v527 = vpop.f32.mrf.mxu0
  %v528 = vpop.f32.mrf.mxu0
  %v529 = vadd.f32 0.0, %v528
  %v530 = vpop.f32.mrf.mxu0
  %531 = vmatprep.mubr.bf16.mxu0 0
  %532 = vmatmul.mubr.bf16.gmra.mxu0 %v376
  %v533 = vpop.f32.mrf.mxu0
  %v534 = vadd.f32 0.0, %v533
  %v535 = vpop.f32.mrf.mxu0
  %v536 = vpop.f32.mrf.mxu0
  %v537 = vadd.f32 0.0, %v536
  %v538 = vpop.f32.mrf.mxu0
  %539 = vmatprep.mubr.bf16.mxu0 0
  %540 = vmatmul.mubr.bf16.gmra.mxu0 %v379
  %v541 = vpop.f32.mrf.mxu0
  %v542 = vadd.f32 0.0, %v541
  %v543 = vpop.f32.mrf.mxu0
  %v544 = vpop.f32.mrf.mxu0
  %v545 = vadd.f32 0.0, %v544
  %v546 = vpop.f32.mrf.mxu0
  %547 = vmatprep.mubr.bf16.mxu0 0
  %548 = vmatmul.mubr.bf16.gmra.mxu0 %v382
  %v549 = vpop.f32.mrf.mxu0
  %v550 = vadd.f32 0.0, %v549
  %v551 = vpop.f32.mrf.mxu0
  %v552 = vpop.f32.mrf.mxu0
  %v553 = vadd.f32 0.0, %v552
  %v554 = vpop.f32.mrf.mxu0
  %555 = vmatprep.mubr.bf16.mxu0 0
  %556 = vmatmul.mubr.bf16.gmra.mxu0 %v385
  %v557 = vpop.f32.mrf.mxu0
  %v558 = vadd.f32 0.0, %v557
  %v559 = vpop.f32.mrf.mxu0
  %v560 = vpop.f32.mrf.mxu0
  %v561 = vadd.f32 0.0, %v560
  %v562 = vpop.f32.mrf.mxu0
  %563 = vmatprep.mubr.bf16.mxu0 0
  %564 = vmatmul.mubr.bf16.gmra.mxu0 %v388
  %v565 = vpop.f32.mrf.mxu0
  %v566 = vadd.f32 0.0, %v565
  %v567 = vpop.f32.mrf.mxu0
  %v568 = vpop.f32.mrf.mxu0
  %v569 = vadd.f32 0.0, %v568
  %v570 = vpop.f32.mrf.mxu0
  %571 = vmatprep.mubr.bf16.mxu0 0
  %572 = vmatmul.mubr.bf16.gmra.mxu0 %v391
  %v573 = vpop.f32.mrf.mxu0
  %v574 = vadd.f32 0.0, %v573
  %v575 = vpop.f32.mrf.mxu0
  %v576 = vpop.f32.mrf.mxu0
  %v577 = vadd.f32 0.0, %v576
  %v578 = vpop.f32.mrf.mxu0
  %579 = vmatprep.mubr.bf16.mxu0 0
  %580 = vmatmul.mubr.bf16.gmra.mxu0 %v394
  %v581 = vpop.f32.mrf.mxu0
  %v582 = vadd.f32 0.0, %v581
  %v583 = vpop.f32.mrf.mxu0
  %v584 = vpop.f32.mrf.mxu0
  %v585 = vadd.f32 0.0, %v584
  %v586 = vpop.f32.mrf.mxu0
  %587 = vmatprep.mubr.bf16.mxu0 0
  %588 = vmatmul.mubr.bf16.gmra.mxu0 %v397
  %v589 = vpop.f32.mrf.mxu0
  %v590 = vadd.f32 0.0, %v589
  %v591 = vpop.f32.mrf.mxu0
  %v592 = vpop.f32.mrf.mxu0
  %v593 = vadd.f32 0.0, %v592
  %v594 = vpop.f32.mrf.mxu0
  %595 = vmatprep.mubr.bf16.mxu0 0
  %596 = vmatmul.mubr.bf16.gmra.mxu0 %v400
  %v597 = vpop.f32.mrf.mxu0
  %v598 = vadd.f32 0.0, %v597
  %v599 = vpop.f32.mrf.mxu0
  %v600 = vpop.f32.mrf.mxu0
  %v601 = vadd.f32 0.0, %v600
  %v602 = vpop.f32.mrf.mxu0
  %603 = vmatprep.mubr.bf16.mxu0 0
  %604 = vmatmul.mubr.bf16.gmra.mxu0 %v403
  %v605 = vpop.f32.mrf.mxu0
  %v606 = vadd.f32 0.0, %v605
  %v607 = vpop.f32.mrf.mxu0
  %v608 = vpop.f32.mrf.mxu0
  %v609 = vadd.f32 0.0, %v608
  %v610 = vpop.f32.mrf.mxu0
  %611 = vmatprep.mubr.bf16.mxu0 0
  %612 = vmatmul.mubr.bf16.gmra.mxu0 %v406
  %v613 = vpop.f32.mrf.mxu0
  %v614 = vadd.f32 0.0, %v613
  %v615 = vpop.f32.mrf.mxu0
  %v616 = vpop.f32.mrf.mxu0
  %v617 = vadd.f32 0.0, %v616
  %v618 = vpop.f32.mrf.mxu0
  %619 = vmatprep.mubr.bf16.mxu0 0
  %620 = vmatmul.mubr.bf16.gmra.mxu0 %v409
  %v621 = vpop.f32.mrf.mxu0
  %v622 = vadd.f32 0.0, %v621
  %v623 = vpop.f32.mrf.mxu0
  %v624 = vpop.f32.mrf.mxu0
  %v625 = vadd.f32 0.0, %v624
  %v626 = vpop.f32.mrf.mxu0
  %627 = vmatprep.mubr.bf16.mxu0 0
  %628 = vmatmul.mubr.bf16.gmra.mxu0 %v412
  %v629 = vpop.f32.mrf.mxu0
  %v630 = vadd.f32 0.0, %v629
  %v631 = vpop.f32.mrf.mxu0
  %v632 = vpop.f32.mrf.mxu0
  %v633 = vadd.f32 0.0, %v632
  %v634 = vpop.f32.mrf.mxu0
  %635 = vmatprep.mubr.bf16.mxu0 0
  %636 = vmatmul.mubr.bf16.gmra.mxu0 %v415
  %v637 = vpop.f32.mrf.mxu0
  %v638 = vadd.f32 0.0, %v637
  %v639 = vpop.f32.mrf.mxu0
  %v640 = vpop.f32.mrf.mxu0
  %v641 = vadd.f32 0.0, %v640
  %v642 = vpop.f32.mrf.mxu0
  %643 = vmatprep.mubr.bf16.mxu0 0
  %644 = vmatmul.mubr.bf16.gmra.mxu0 %v418
  %v645 = vpop.f32.mrf.mxu0
  %v646 = vadd.f32 0.0, %v645
  %v647 = vpop.f32.mrf.mxu0
  %v648 = vpop.f32.mrf.mxu0
  %v649 = vadd.f32 0.0, %v648
  %v650 = vpop.f32.mrf.mxu0
  %651 = vmatprep.mubr.bf16.mxu0 0
  %652 = vmatmul.mubr.bf16.gmra.mxu0 %v421
  %v653 = vpop.f32.mrf.mxu0
  %v654 = vadd.f32 0.0, %v653
  %v655 = vpop.f32.mrf.mxu0
  %v656 = vpop.f32.mrf.mxu0
  %v657 = vpop.f32.mrf.mxu0
  %658 = vdwg.mxu0
  %v659 = vadd.f32 %v126, %v462
  %v660 = vadd.f32 %v127, %v465
  %v661 = vadd.f32 %v128, %v470
  %v662 = vadd.f32 %v129, %v473
  %v663 = vadd.f32 %v130, %v478
  %v664 = vadd.f32 %v131, %v481
  %v665 = vadd.f32 %v132, %v486
  %v666 = vadd.f32 %v133, %v489
  %v667 = vadd.f32 %v134, %v494
  %v668 = vadd.f32 %v135, %v497
  %v669 = vadd.f32 %v136, %v502
  %v670 = vadd.f32 %v137, %v505
  %v671 = vadd.f32 %v138, %v510
  %v672 = vadd.f32 %v139, %v513
  %v673 = vadd.f32 %v140, %v518
  %v674 = vadd.f32 %v141, %v521
  %v675 = vadd.f32 %v142, %v526
  %v676 = vadd.f32 %v143, %v529
  %v677 = vadd.f32 %v144, %v534
  %v678 = vadd.f32 %v145, %v537
  %v679 = vadd.f32 %v146, %v542
  %v680 = vadd.f32 %v147, %v545
  %v681 = vadd.f32 %v148, %v550
  %v682 = vadd.f32 %v149, %v553
  %v683 = vadd.f32 %v150, %v558
  %v684 = vadd.f32 %v151, %v561
  %v685 = vadd.f32 %v152, %v566
  %v686 = vadd.f32 %v153, %v569
  %v687 = vadd.f32 %v154, %v574
  %v688 = vadd.f32 %v155, %v577
  %v689 = vadd.f32 %v156, %v582
  %v690 = vadd.f32 %v157, %v585
  %v691 = vadd.f32 %v158, %v590
  %v692 = vadd.f32 %v159, %v593
  %v693 = vadd.f32 %v160, %v598
  %v694 = vadd.f32 %v161, %v601
  %v695 = vadd.f32 %v162, %v606
  %v696 = vadd.f32 %v163, %v609
  %v697 = vadd.f32 %v164, %v614
  %v698 = vadd.f32 %v165, %v617
  %v699 = vadd.f32 %v166, %v622
  %v700 = vadd.f32 %v167, %v625
  %v701 = vadd.f32 %v168, %v630
  %v702 = vadd.f32 %v169, %v633
  %v703 = vadd.f32 %v170, %v638
  %v704 = vadd.f32 %v171, %v641
  %v705 = vadd.f32 %v172, %v646
  %v706 = vadd.f32 %v173, %v649
  %v707 = vadd.f32 %v174, %v654
  %708 = vst [vmem:[#allocation2] sm:$0xff] %v659
  %709 = vst [vmem:[#allocation2 + $0x8] sm:$0xff] %v660
  %710 = vst [vmem:[#allocation2 + $0x10] sm:$0xff] %v661
  %711 = vst [vmem:[#allocation2 + $0x18] sm:$0xff] %v662
  %712 = vst [vmem:[#allocation2 + $0x20] sm:$0xff] %v663
  %713 = vst [vmem:[#allocation2 + $0x28] sm:$0xff] %v664
  %714 = vst [vmem:[#allocation2 + $0x30] sm:$0xff] %v665
  %715 = vst [vmem:[#allocation2 + $0x38] sm:$0xff] %v666
  %716 = vst [vmem:[#allocation2 + $0x40] sm:$0xff] %v667
  %717 = vst [vmem:[#allocation2 + $0x48] sm:$0xff] %v668
  %718 = vst [vmem:[#allocation2 + $0x50] sm:$0xff] %v669
  %719 = vst [vmem:[#allocation2 + $0x58] sm:$0xff] %v670
  %720 = vst [vmem:[#allocation2 + $0x60] sm:$0xff] %v671
  %721 = vst [vmem:[#allocation2 + $0x68] sm:$0xff] %v672
  %722 = vst [vmem:[#allocation2 + $0x70] sm:$0xff] %v673
  %723 = vst [vmem:[#allocation2 + $0x78] sm:$0xff] %v674
  %724 = vst [vmem:[#allocation2 + $0x80] sm:$0xff] %v675
  %725 = vst [vmem:[#allocation2 + $0x88] sm:$0xff] %v676
  %726 = vst [vmem:[#allocation2 + $0x90] sm:$0xff] %v677
  %727 = vst [vmem:[#allocation2 + $0x98] sm:$0xff] %v678
  %728 = vst [vmem:[#allocation2 + $0xa0] sm:$0xff] %v679
  %729 = vst [vmem:[#allocation2 + $0xa8] sm:$0xff] %v680
  %730 = vst [vmem:[#allocation2 + $0xb0] sm:$0xff] %v681
  %731 = vst [vmem:[#allocation2 + $0xb8] sm:$0xff] %v682
  %732 = vst [vmem:[#allocation2 + $0xc0] sm:$0xff] %v683
  %733 = vst [vmem:[#allocation2 + $0xc8] sm:$0xff] %v684
  %734 = vst [vmem:[#allocation2 + $0xd0] sm:$0xff] %v685
  %735 = vst [vmem:[#allocation2 + $0xd8] sm:$0xff] %v686
  %736 = vst [vmem:[#allocation2 + $0xe0] sm:$0xff] %v687
  %737 = vst [vmem:[#allocation2 + $0xe8] sm:$0xff] %v688
  %738 = vst [vmem:[#allocation2 + $0xf0] sm:$0xff] %v689
  %739 = vst [vmem:[#allocation2 + $0xf8] sm:$0xff] %v690
  %740 = vst [vmem:[#allocation2 + $0x100] sm:$0xff] %v691
  %741 = vst [vmem:[#allocation2 + $0x108] sm:$0xff] %v692
  %742 = vst [vmem:[#allocation2 + $0x110] sm:$0xff] %v693
  %743 = vst [vmem:[#allocation2 + $0x118] sm:$0xff] %v694
  %744 = vst [vmem:[#allocation2 + $0x120] sm:$0xff] %v695
  %745 = vst [vmem:[#allocation2 + $0x128] sm:$0xff] %v696
  %746 = vst [vmem:[#allocation2 + $0x130] sm:$0xff] %v697
  %747 = vst [vmem:[#allocation2 + $0x138] sm:$0xff] %v698
  %748 = vst [vmem:[#allocation2 + $0x140] sm:$0xff] %v699
  %749 = vst [vmem:[#allocation2 + $0x148] sm:$0xff] %v700
  %750 = vst [vmem:[#allocation2 + $0x150] sm:$0xff] %v701
  %751 = vst [vmem:[#allocation2 + $0x158] sm:$0xff] %v702
  %752 = vst [vmem:[#allocation2 + $0x160] sm:$0xff] %v703
  %753 = vst [vmem:[#allocation2 + $0x168] sm:$0xff] %v704
  %754 = vst [vmem:[#allocation2 + $0x170] sm:$0xff] %v705
  %755 = vst [vmem:[#allocation2 + $0x178] sm:$0xff] %v706
  %756 = vst [vmem:[#allocation2 + $0x180] sm:$0xff] %v707
  // Predicated region
  $region22: #{qconv2d_forward.1} parent=0 // pred_check
    %p757 = pneg %p18
  $region23: #{qconv2d_forward.1} parent=0 // pred_check_branch
    %759 = sbr.rel (%p757) target = $region25
  $region24: #{qconv2d_forward.1} parent=0 // pred_region
    %v760 = vld [vmem:[#allocation2] sm:$0xff]
    %v761 = vld [vmem:[#allocation2 + $0x8] sm:$0xff]
    %v762 = vld [vmem:[#allocation2 + $0x10] sm:$0xff]
    %v763 = vld [vmem:[#allocation2 + $0x18] sm:$0xff]
    %v764 = vld [vmem:[#allocation2 + $0x20] sm:$0xff]
    %v765 = vld [vmem:[#allocation2 + $0x28] sm:$0xff]
    %v766 = vld [vmem:[#allocation2 + $0x30] sm:$0xff]
    %v767 = vld [vmem:[#allocation2 + $0x38] sm:$0xff]
    %v768 = vld [vmem:[#allocation2 + $0x40] sm:$0xff]
    %v769 = vld [vmem:[#allocation2 + $0x48] sm:$0xff]
    %v770 = vld [vmem:[#allocation2 + $0x50] sm:$0xff]
    %v771 = vld [vmem:[#allocation2 + $0x58] sm:$0xff]
    %v772 = vld [vmem:[#allocation2 + $0x60] sm:$0xff]
    %v773 = vld [vmem:[#allocation2 + $0x68] sm:$0xff]
    %v774 = vld [vmem:[#allocation2 + $0x70] sm:$0xff]
    %v775 = vld [vmem:[#allocation2 + $0x78] sm:$0xff]
    %v776 = vld [vmem:[#allocation2 + $0x80] sm:$0xff]
    %v777 = vld [vmem:[#allocation2 + $0x88] sm:$0xff]
    %v778 = vld [vmem:[#allocation2 + $0x90] sm:$0xff]
    %v779 = vld [vmem:[#allocation2 + $0x98] sm:$0xff]
    %v780 = vld [vmem:[#allocation2 + $0xa0] sm:$0xff]
    %v781 = vld [vmem:[#allocation2 + $0xa8] sm:$0xff]
    %v782 = vld [vmem:[#allocation2 + $0xb0] sm:$0xff]
    %v783 = vld [vmem:[#allocation2 + $0xb8] sm:$0xff]
    %v784 = vld [vmem:[#allocation2 + $0xc0] sm:$0xff]
    %v785 = vld [vmem:[#allocation2 + $0xc8] sm:$0xff]
    %v786 = vld [vmem:[#allocation2 + $0xd0] sm:$0xff]
    %v787 = vld [vmem:[#allocation2 + $0xd8] sm:$0xff]
    %v788 = vld [vmem:[#allocation2 + $0xe0] sm:$0xff]
    %v789 = vld [vmem:[#allocation2 + $0xe8] sm:$0xff]
    %v790 = vld [vmem:[#allocation2 + $0xf0] sm:$0xff]
    %v791 = vld [vmem:[#allocation2 + $0xf8] sm:$0xff]
    %v792 = vld [vmem:[#allocation2 + $0x100] sm:$0xff]
    %v793 = vld [vmem:[#allocation2 + $0x108] sm:$0xff]
    %v794 = vld [vmem:[#allocation2 + $0x110] sm:$0xff]
    %v795 = vld [vmem:[#allocation2 + $0x118] sm:$0xff]
    %v796 = vld [vmem:[#allocation2 + $0x120] sm:$0xff]
    %v797 = vld [vmem:[#allocation2 + $0x128] sm:$0xff]
    %v798 = vld [vmem:[#allocation2 + $0x130] sm:$0xff]
    %v799 = vld [vmem:[#allocation2 + $0x138] sm:$0xff]
    %v800 = vld [vmem:[#allocation2 + $0x140] sm:$0xff]
    %v801 = vld [vmem:[#allocation2 + $0x148] sm:$0xff]
    %v802 = vld [vmem:[#allocation2 + $0x150] sm:$0xff]
    %v803 = vld [vmem:[#allocation2 + $0x158] sm:$0xff]
    %v804 = vld [vmem:[#allocation2 + $0x160] sm:$0xff]
    %v805 = vld [vmem:[#allocation2 + $0x168] sm:$0xff]
    %v806 = vld [vmem:[#allocation2 + $0x170] sm:$0xff]
    %v807 = vld [vmem:[#allocation2 + $0x178] sm:$0xff]
    %v808 = vld [vmem:[#allocation2 + $0x180] sm:$0xff]
    %v809 = vpow.pop %v71
    %v811 = vlaneseq
    %v812 = vshrl.u32 %v811, 7
    %v813 = vsub.s32 0, %v812
    %v814 = vrot.slane %v809, %v813
    %v816 = vmul.f32 %v760, %v814
    %v817 = vmul.f32 %v761, %v814
    %v818 = vmul.f32 %v762, %v814
    %v819 = vmul.f32 %v763, %v814
    %v820 = vmul.f32 %v764, %v814
    %v821 = vmul.f32 %v765, %v814
    %v822 = vmul.f32 %v766, %v814
    %v823 = vmul.f32 %v767, %v814
    %v824 = vmul.f32 %v768, %v814
    %v825 = vmul.f32 %v769, %v814
    %v826 = vmul.f32 %v770, %v814
    %v827 = vmul.f32 %v771, %v814
    %v828 = vmul.f32 %v772, %v814
    %v829 = vmul.f32 %v773, %v814
    %v830 = vmul.f32 %v774, %v814
    %v831 = vmul.f32 %v775, %v814
    %v832 = vmul.f32 %v776, %v814
    %v833 = vmul.f32 %v777, %v814
    %v834 = vmul.f32 %v778, %v814
    %v835 = vmul.f32 %v779, %v814
    %v836 = vmul.f32 %v780, %v814
    %v837 = vmul.f32 %v781, %v814
    %v838 = vmul.f32 %v782, %v814
    %v839 = vmul.f32 %v783, %v814
    %v840 = vmul.f32 %v784, %v814
    %v841 = vmul.f32 %v785, %v814
    %v842 = vmul.f32 %v786, %v814
    %v843 = vmul.f32 %v787, %v814
    %v844 = vmul.f32 %v788, %v814
    %v845 = vmul.f32 %v789, %v814
    %v846 = vmul.f32 %v790, %v814
    %v847 = vmul.f32 %v791, %v814
    %v848 = vmul.f32 %v792, %v814
    %v849 = vmul.f32 %v793, %v814
    %v850 = vmul.f32 %v794, %v814
    %v851 = vmul.f32 %v795, %v814
    %v852 = vmul.f32 %v796, %v814
    %v853 = vmul.f32 %v797, %v814
    %v854 = vmul.f32 %v798, %v814
    %v855 = vmul.f32 %v799, %v814
    %v856 = vmul.f32 %v800, %v814
    %v857 = vmul.f32 %v801, %v814
    %v858 = vmul.f32 %v802, %v814
    %v859 = vmul.f32 %v803, %v814
    %v860 = vmul.f32 %v804, %v814
    %v861 = vmul.f32 %v805, %v814
    %v862 = vmul.f32 %v806, %v814
    %v863 = vmul.f32 %v807, %v814
    %v864 = vmul.f32 %v808, %v814
    %865 = vst [vmem:[%s4] sm:$0xff] %v816
    %866 = vst [vmem:[%s4 + $0x8] sm:$0xff] %v817
    %867 = vst [vmem:[%s4 + $0x10] sm:$0xff] %v818
    %868 = vst [vmem:[%s4 + $0x18] sm:$0xff] %v819
    %869 = vst [vmem:[%s4 + $0x20] sm:$0xff] %v820
    %870 = vst [vmem:[%s4 + $0x28] sm:$0xff] %v821
    %871 = vst [vmem:[%s4 + $0x30] sm:$0xff] %v822
    %872 = vst [vmem:[%s4 + $0x38] sm:$0xff] %v823
    %873 = vst [vmem:[%s4 + $0x40] sm:$0xff] %v824
    %874 = vst [vmem:[%s4 + $0x48] sm:$0xff] %v825
    %875 = vst [vmem:[%s4 + $0x50] sm:$0xff] %v826
    %876 = vst [vmem:[%s4 + $0x58] sm:$0xff] %v827
    %877 = vst [vmem:[%s4 + $0x60] sm:$0xff] %v828
    %878 = vst [vmem:[%s4 + $0x68] sm:$0xff] %v829
    %879 = vst [vmem:[%s4 + $0x70] sm:$0xff] %v830
    %880 = vst [vmem:[%s4 + $0x78] sm:$0xff] %v831
    %881 = vst [vmem:[%s4 + $0x80] sm:$0xff] %v832
    %882 = vst [vmem:[%s4 + $0x88] sm:$0xff] %v833
    %883 = vst [vmem:[%s4 + $0x90] sm:$0xff] %v834
    %884 = vst [vmem:[%s4 + $0x98] sm:$0xff] %v835
    %885 = vst [vmem:[%s4 + $0xa0] sm:$0xff] %v836
    %886 = vst [vmem:[%s4 + $0xa8] sm:$0xff] %v837
    %887 = vst [vmem:[%s4 + $0xb0] sm:$0xff] %v838
    %888 = vst [vmem:[%s4 + $0xb8] sm:$0xff] %v839
    %889 = vst [vmem:[%s4 + $0xc0] sm:$0xff] %v840
    %890 = vst [vmem:[%s4 + $0xc8] sm:$0xff] %v841
    %891 = vst [vmem:[%s4 + $0xd0] sm:$0xff] %v842
    %892 = vst [vmem:[%s4 + $0xd8] sm:$0xff] %v843
    %893 = vst [vmem:[%s4 + $0xe0] sm:$0xff] %v844
    %894 = vst [vmem:[%s4 + $0xe8] sm:$0xff] %v845
    %895 = vst [vmem:[%s4 + $0xf0] sm:$0xff] %v846
    %896 = vst [vmem:[%s4 + $0xf8] sm:$0xff] %v847
    %897 = vst [vmem:[%s4 + $0x100] sm:$0xff] %v848
    %898 = vst [vmem:[%s4 + $0x108] sm:$0xff] %v849
    %899 = vst [vmem:[%s4 + $0x110] sm:$0xff] %v850
    %900 = vst [vmem:[%s4 + $0x118] sm:$0xff] %v851
    %901 = vst [vmem:[%s4 + $0x120] sm:$0xff] %v852
    %902 = vst [vmem:[%s4 + $0x128] sm:$0xff] %v853
    %903 = vst [vmem:[%s4 + $0x130] sm:$0xff] %v854
    %904 = vst [vmem:[%s4 + $0x138] sm:$0xff] %v855
    %905 = vst [vmem:[%s4 + $0x140] sm:$0xff] %v856
    %906 = vst [vmem:[%s4 + $0x148] sm:$0xff] %v857
    %907 = vst [vmem:[%s4 + $0x150] sm:$0xff] %v858
    %908 = vst [vmem:[%s4 + $0x158] sm:$0xff] %v859
    %909 = vst [vmem:[%s4 + $0x160] sm:$0xff] %v860
    %910 = vst [vmem:[%s4 + $0x168] sm:$0xff] %v861
    %911 = vst [vmem:[%s4 + $0x170] sm:$0xff] %v862
    %912 = vst [vmem:[%s4 + $0x178] sm:$0xff] %v863
    %913 = vst [vmem:[%s4 + $0x180] sm:$0xff] %v864
  $region25: #{qconv2d_forward.1} parent=0 // pred_fallthru
    _
  // Predicated region
  $region26: #{qconv2d_forward.1} parent=0 // pred_check
    _
  $region27: #{qconv2d_forward.1} parent=0 // pred_check_branch
    %915 = sbr.rel (0) target = $region29
  $region28: #{qconv2d_forward.1} parent=0 // pred_region
    _
  $region29: #{qconv2d_forward.1} parent=0 // pred_fallthru
    _
  // Predicated region
  $region30: #{qconv2d_forward.1} parent=0 // pred_check
    _
  $region31: #{qconv2d_forward.1} parent=0 // pred_check_branch
    %917 = sbr.rel (0) target = $region33
  $region32: #{qconv2d_forward.1} parent=0 // pred_region
    _
  $region33: #{qconv2d_forward.1} parent=0 // pred_fallthru
    _

</llo_original>
